<compile_context>
chip_gen: v6e
topology: v6e:2x2x1
jax: 0.10.0
libtpu: 0.0.40
codegen_flags: <defaults>
</compile_context>

<pallas_src>
import functools

import jax
import jax.numpy as jnp
from jax.experimental import pallas as pl
from jax.experimental.pallas import tpu as pltpu


# ----------------------------------------------------------------------------
# Fused kernel: block-diagonal (conv1+bn1+relu, conv2+bn2+relu) over all
# pooling corners at once, then max over the corner groups.
#   x_ref : (1, nc*Cin, tp)   bf16   -- nc = 4 (pooling) or 1
#   w1    : (nc*Cout, nc*Cin) bf16   -- block-diag, BN1 scale folded in
#   b1    : (nc*Cout, 1)      f32
#   w2    : (nc*Cout, nc*Cout)bf16   -- block-diag, BN2 scale folded in
#   b2    : (nc*Cout, 1)      f32
#   o_ref : (1, Cout, tp)     bf16   -- pooled output tile (lane-dense)
# ----------------------------------------------------------------------------
def _fused_kernel(x_ref, w1_ref, b1_ref, w2_ref, b2_ref, o_ref, *, ncorners, cout):
    x = x_ref[0]                                                  # (nc*Cin, tp) bf16
    w1 = w1_ref[...]
    b1 = b1_ref[...]
    w2 = w2_ref[...]
    b2 = b2_ref[...]

    h = jnp.dot(w1, x, preferred_element_type=jnp.float32)       # (nc*Cout, tp) f32
    h = jnp.maximum(h + b1, 0.0)                                  # bn1 (bias) + relu
    y = jnp.dot(w2, h.astype(w2.dtype),
                preferred_element_type=jnp.float32)               # (nc*Cout, tp) f32
    y = jnp.maximum(y + b2, 0.0)                                  # bn2 + relu (+F.relu no-op)

    # Max over corner groups: each (Cout, tp) f32 group is sublane-tile aligned.
    out = y[:cout, :]
    for g in range(1, ncorners):                                  # static unroll (<= 3)
        out = jnp.maximum(out, y[g * cout:(g + 1) * cout, :])
    o_ref[0] = out.astype(o_ref.dtype)


def _vmem_limit_bytes():
    """Generation-aware scoped-VMEM limit (v5e/v6e: 128 MiB phys -> 64 MiB;
    v7x: 64 MiB shared by 2 TCs -> 32 MiB per-core budget)."""
    try:
        cap = int(pltpu.get_tpu_info().vmem_capacity_bytes)
    except Exception:
        cap = 64 << 20                            # conservative (v7x-sized) fallback
    return min(cap // 2, 64 << 20)


def _cdiv(a, b):
    return -(-a // b)


def _pick_tile(p_img, cin, cout, ncorners, vmem_limit_bytes):
    """Balanced pixel tiles: largest tp (multiple of 128, capped at 4096 so the
    v7x megacore always has >=2 units of work for medium P) that fits the
    double-buffered working set, then rebalanced so tail padding is minimal."""
    budget = vmem_limit_bytes // 2
    # double-buffered bf16 in/out blocks + f32 intermediates (h and y)
    bytes_per_col = (2 * (ncorners * cin * 2 + cout * 2)
                     + 2 * ncorners * cout * 4)
    tp_max = (budget // max(bytes_per_col, 1)) // 128 * 128
    tp_max = max(128, min(tp_max, 4096))
    num_tiles = _cdiv(p_img, tp_max)
    tp = _cdiv(_cdiv(p_img, num_tiles), 128) * 128
    return tp, num_tiles


def _fused_call(xc, w1, b1, w2, b2, *, cout, ncorners, tp, vmem_limit_bytes):
    n, rows, p_pad = xc.shape
    grid = (n, p_pad // tp)
    kernel = functools.partial(_fused_kernel, ncorners=ncorners, cout=cout)
    return pl.pallas_call(
        kernel,
        out_shape=jax.ShapeDtypeStruct((n, cout, p_pad), jnp.bfloat16),
        grid=grid,
        in_specs=[
            pl.BlockSpec((1, rows, tp), lambda b, i: (b, 0, i)),
            # Resident tiny operands (constant index_map).
            pl.BlockSpec(w1.shape, lambda b, i: (0, 0)),
            pl.BlockSpec(b1.shape, lambda b, i: (0, 0)),
            pl.BlockSpec(w2.shape, lambda b, i: (0, 0)),
            pl.BlockSpec(b2.shape, lambda b, i: (0, 0)),
        ],
        out_specs=pl.BlockSpec((1, cout, tp), lambda b, i: (b, 0, i)),
        compiler_params=pltpu.CompilerParams(
            dimension_semantics=("parallel", "parallel"),   # megacore sharding
            vmem_limit_bytes=vmem_limit_bytes,
        ),
    )(xc, w1, b1, w2, b2)


# ---------------- Module wrapper (NCHW in / NCHW out) ----------------
def block_last_forward(x_nchw, params, pooling=True):
    w1s, b1, w2s, b2 = params                      # scale-folded bf16 weights, f32 biases
    n, cin, h, w = x_nchw.shape
    cout = w1s.shape[0]

    if pooling:
        assert h % 2 == 0 and w % 2 == 0, "2x2/stride-2 pool needs even H, W"
        ho, wo = h // 2, w // 2
        nc = 4
        # Single fused transpose+cast: (N,Cin,Ho,2,Wo,2) -> (N, 2,2,Cin, Ho,Wo)
        # -> (N, 4*Cin, P). Corner-major rows keep the bf16 sublane tile dense.
        xr = x_nchw.reshape(n, cin, ho, 2, wo, 2)
        xc = jnp.transpose(xr, (0, 3, 5, 1, 2, 4)).astype(jnp.bfloat16)
        xc = xc.reshape(n, nc * cin, ho * wo)
    else:
        ho, wo = h, w
        nc = 1
        xc = x_nchw.astype(jnp.bfloat16).reshape(n, cin, ho * wo)
    p_img = ho * wo

    vmem_limit = _vmem_limit_bytes()
    tp, num_tiles = _pick_tile(p_img, cin, cout, nc, vmem_limit)
    p_pad = num_tiles * tp
    if p_pad != p_img:
        xc = jnp.pad(xc, ((0, 0), (0, 0), (0, p_pad - p_img)))

    # Block-diagonal corner packing (exact: multiplies by 0/1 in f32).
    if nc > 1:
        eye = jnp.eye(nc, dtype=jnp.float32)
        w1k = jnp.kron(eye, w1s.astype(jnp.float32)).astype(jnp.bfloat16)
        w2k = jnp.kron(eye, w2s.astype(jnp.float32)).astype(jnp.bfloat16)
        b1k = jnp.tile(b1, (nc, 1))
        b2k = jnp.tile(b2, (nc, 1))
    else:
        w1k, w2k, b1k, b2k = w1s, w2s, b1, b2

    y = _fused_call(xc, w1k, b1k, w2k, b2k, cout=cout, ncorners=nc,
                    tp=tp, vmem_limit_bytes=vmem_limit)      # (N, Cout, Ppad) bf16
    y = y[:, :, :p_img].reshape(n, cout, ho, wo)             # NCHW pooled, pad trimmed
    return y


# ---------------- Parameter construction (BN folded, eval mode) ----------------
def make_params(key, in_channels, out_channels, eps=1e-5):
    ks = jax.random.split(key, 8)
    # conv weights (bias=False), PyTorch orientation (Cout, Cin).
    w1 = jax.random.normal(ks[0], (out_channels, in_channels), jnp.float32) * 0.3
    w2 = jax.random.normal(ks[1], (out_channels, out_channels), jnp.float32) * 0.3
    # BatchNorm2d params (eval-mode semantics with running stats).
    g1 = jax.random.uniform(ks[2], (out_channels,), jnp.float32, 0.5, 1.5)
    be1 = jax.random.normal(ks[3], (out_channels,), jnp.float32) * 0.1
    m1 = jax.random.normal(ks[4], (out_channels,), jnp.float32) * 0.1
    v1 = jax.random.uniform(ks[5], (out_channels,), jnp.float32, 0.5, 1.5)
    g2 = jax.random.uniform(ks[6], (out_channels,), jnp.float32, 0.5, 1.5)
    be2 = jax.random.normal(ks[7], (out_channels,), jnp.float32) * 0.1
    m2 = jnp.zeros((out_channels,), jnp.float32)
    v2 = jnp.ones((out_channels,), jnp.float32)
    # Fold BN: y = scale * conv(x) + bias; fold scale into weight rows in f32,
    # then cast to bf16 (per review correctness note).
    s1 = g1 / jnp.sqrt(v1 + eps)
    b1 = be1 - m1 * s1
    s2 = g2 / jnp.sqrt(v2 + eps)
    b2 = be2 - m2 * s2
    w1s = (w1 * s1[:, None]).astype(jnp.bfloat16)
    w2s = (w2 * s2[:, None]).astype(jnp.bfloat16)
    return (w1s, b1.reshape(-1, 1), w2s, b2.reshape(-1, 1))


def reference_forward(x_nchw, params, pooling=True):
    """Pure-JAX reference mirroring the kernel's bf16-matmul / f32-accumulate."""
    w1s, b1, w2s, b2 = params
    n, cin, h, w = x_nchw.shape
    cout = w1s.shape[0]
    xb = x_nchw.astype(jnp.bfloat16)
    h1 = jnp.einsum("oc,nchw->nohw", w1s, xb, preferred_element_type=jnp.float32)
    h1 = jnp.maximum(h1 + b1.reshape(1, cout, 1, 1), 0.0)
    y = jnp.einsum("oc,nchw->nohw", w2s, h1.astype(jnp.bfloat16),
                   preferred_element_type=jnp.float32)
    y = jnp.maximum(y + b2.reshape(1, cout, 1, 1), 0.0)
    y = jnp.maximum(y, 0.0)                                   # extra F.relu no-op
    if pooling:
        y = y.reshape(n, cout, h // 2, 2, w // 2, 2).max(axis=(3, 5))
    return y


if __name__ == "__main__":
    key = jax.random.PRNGKey(0)
    kx, kp = jax.random.split(key)

    n, cin, cout, h, w = 2, 4, 8, 16, 16
    x = jax.random.normal(kx, (n, cin, h, w), jnp.float32)
    params = make_params(kp, cin, cout)

    fwd = jax.jit(block_last_forward, static_argnames=("pooling",))

    # pooling=True path (fused conv+bn+relu x2 + 2x2 maxpool)
    out = jax.block_until_ready(fwd(x, params, pooling=True))
    ref = reference_forward(x, params, pooling=True)
    assert out.shape == (n, cout, h // 2, w // 2), out.shape
    assert out.dtype == jnp.bfloat16
    out_f32 = out.astype(jnp.float32)
    assert jnp.allclose(out_f32, ref, atol=2e-2, rtol=2e-2), \
        float(jnp.max(jnp.abs(out_f32 - ref)))

    # pooling=False path (same kernel, single "corner")
    out_np = jax.block_until_ready(fwd(x, params, pooling=False))
    ref_np = reference_forward(x, params, pooling=False)
    assert out_np.shape == (n, cout, h, w), out_np.shape
    assert jnp.allclose(out_np.astype(jnp.float32), ref_np, atol=2e-2, rtol=2e-2)

    print("KERNEL_OK")
</pallas_src>

<mosaic_0001>
module attributes {stable_mosaic.version = 11 : i64} {
  func.func @_fused_kernel(%arg0: i32, %arg1: i32, %arg2: memref<1x16x128xbf16, #tpu.memory_space<vmem>>, %arg3: memref<32x16xbf16, #tpu.memory_space<vmem>>, %arg4: memref<32x1xf32, #tpu.memory_space<vmem>>, %arg5: memref<32x32xbf16, #tpu.memory_space<vmem>>, %arg6: memref<32x1xf32, #tpu.memory_space<vmem>>, %arg7: memref<1x8x128xbf16, #tpu.memory_space<vmem>>) attributes {dimension_semantics = [#tpu.dimension_semantics<parallel>, #tpu.dimension_semantics<parallel>], iteration_bounds = array<i64: 2, 1>, scalar_prefetch = 0 : i64, scratch_operands = 0 : i64, tpu.core_type = #tpu.core_type<tc>, window_params = [{transform_indices = @transform_0, window_bounds = array<i64: 1, 16, 128>}, {pipeline_mode = #tpu.pipeline_mode<synchronous>, transform_indices = @transform_1, window_bounds = array<i64: 32, 16>}, {pipeline_mode = #tpu.pipeline_mode<synchronous>, transform_indices = @transform_2, window_bounds = array<i64: 32, 1>}, {pipeline_mode = #tpu.pipeline_mode<synchronous>, transform_indices = @transform_3, window_bounds = array<i64: 32, 32>}, {pipeline_mode = #tpu.pipeline_mode<synchronous>, transform_indices = @transform_4, window_bounds = array<i64: 32, 1>}, {transform_indices = @transform_5, window_bounds = array<i64: 1, 8, 128>}]} {
    %c0 = arith.constant 0 : index
    %c0_0 = arith.constant 0 : index
    %c0_1 = arith.constant 0 : index
    %0 = vector.load %arg2[%c0, %c0_0, %c0_1] : memref<1x16x128xbf16, #tpu.memory_space<vmem>>, vector<1x16x128xbf16>
    %1 = vector.shape_cast %0 : vector<1x16x128xbf16> to vector<16x128xbf16>
    %c0_2 = arith.constant 0 : index
    %c0_3 = arith.constant 0 : index
    %2 = vector.load %arg3[%c0_2, %c0_3] : memref<32x16xbf16, #tpu.memory_space<vmem>>, vector<32x16xbf16>
    %c0_4 = arith.constant 0 : index
    %c0_5 = arith.constant 0 : index
    %3 = vector.load %arg4[%c0_4, %c0_5] : memref<32x1xf32, #tpu.memory_space<vmem>>, vector<32x1xf32>
    %c0_6 = arith.constant 0 : index
    %c0_7 = arith.constant 0 : index
    %4 = vector.load %arg5[%c0_6, %c0_7] : memref<32x32xbf16, #tpu.memory_space<vmem>>, vector<32x32xbf16>
    %c0_8 = arith.constant 0 : index
    %c0_9 = arith.constant 0 : index
    %5 = vector.load %arg6[%c0_8, %c0_9] : memref<32x1xf32, #tpu.memory_space<vmem>>, vector<32x1xf32>
    %cst = arith.constant dense<0.000000e+00> : vector<32x128xf32>
    %6 = tpu.matmul %2, %1, %cst {dimension_numbers = #tpu.dot_dimension_numbers<[1], [0], [0], [1], [0, 0, 1, 1], [], []>} : vector<32x16xbf16>, vector<16x128xbf16>, vector<32x128xf32> -> vector<32x128xf32>
    %7 = vector.broadcast %3 : vector<32x1xf32> to vector<32x128xf32>
    %8 = arith.addf %6, %7 : vector<32x128xf32>
    %cst_10 = arith.constant 0.000000e+00 : f32
    %9 = vector.broadcast %cst_10 : f32 to vector<32x128xf32>
    %10 = arith.maximumf %8, %9 : vector<32x128xf32>
    %11 = arith.truncf %10 : vector<32x128xf32> to vector<32x128xbf16>
    %cst_11 = arith.constant dense<0.000000e+00> : vector<32x128xf32>
    %12 = tpu.matmul %4, %11, %cst_11 {dimension_numbers = #tpu.dot_dimension_numbers<[1], [0], [0], [1], [0, 0, 1, 1], [], []>} : vector<32x32xbf16>, vector<32x128xbf16>, vector<32x128xf32> -> vector<32x128xf32>
    %13 = vector.broadcast %5 : vector<32x1xf32> to vector<32x128xf32>
    %14 = arith.addf %12, %13 : vector<32x128xf32>
    %cst_12 = arith.constant 0.000000e+00 : f32
    %15 = vector.broadcast %cst_12 : f32 to vector<32x128xf32>
    %16 = arith.maximumf %14, %15 : vector<32x128xf32>
    %17 = vector.extract_strided_slice %16 {offsets = [0, 0], sizes = [8, 128], strides = [1, 1]} : vector<32x128xf32> to vector<8x128xf32>
    %18 = vector.extract_strided_slice %16 {offsets = [8, 0], sizes = [8, 128], strides = [1, 1]} : vector<32x128xf32> to vector<8x128xf32>
    %19 = arith.maximumf %17, %18 : vector<8x128xf32>
    %20 = vector.extract_strided_slice %16 {offsets = [16, 0], sizes = [8, 128], strides = [1, 1]} : vector<32x128xf32> to vector<8x128xf32>
    %21 = arith.maximumf %19, %20 : vector<8x128xf32>
    %22 = vector.extract_strided_slice %16 {offsets = [24, 0], sizes = [8, 128], strides = [1, 1]} : vector<32x128xf32> to vector<8x128xf32>
    %23 = arith.maximumf %21, %22 : vector<8x128xf32>
    %24 = arith.truncf %23 : vector<8x128xf32> to vector<8x128xbf16>
    %c0_13 = arith.constant 0 : index
    %c0_14 = arith.constant 0 : index
    %c0_15 = arith.constant 0 : index
    %25 = vector.load %arg7[%c0_13, %c0_14, %c0_15] : memref<1x8x128xbf16, #tpu.memory_space<vmem>>, vector<1x8x128xbf16>
    %26 = vector.shape_cast %25 : vector<1x8x128xbf16> to vector<8x128xbf16>
    %27 = vector.shape_cast %24 : vector<8x128xbf16> to vector<1x8x128xbf16>
    tpu.vector_store %arg7[%c0_13, %c0_14, %c0_15], %27 {strides = array<i32>} : memref<1x8x128xbf16, #tpu.memory_space<vmem>>, vector<1x8x128xbf16>,
    return
  }
  func.func @transform_0(%arg0: i32, %arg1: i32) -> (i32, i32, i32) {
    %c0_i32 = arith.constant 0 : i32
    %c0_i32_0 = arith.constant 0 : i32
    return %arg0, %c0_i32, %arg1 : i32, i32, i32
  }
  func.func @transform_1(%arg0: i32, %arg1: i32) -> (i32, i32) {
    %c0_i32 = arith.constant 0 : i32
    %c0_i32_0 = arith.constant 0 : i32
    %c0_i32_1 = arith.constant 0 : i32
    return %c0_i32, %c0_i32_0 : i32, i32
  }
  func.func @transform_2(%arg0: i32, %arg1: i32) -> (i32, i32) {
    %c0_i32 = arith.constant 0 : i32
    %c0_i32_0 = arith.constant 0 : i32
    %c0_i32_1 = arith.constant 0 : i32
    return %c0_i32, %c0_i32_0 : i32, i32
  }
  func.func @transform_3(%arg0: i32, %arg1: i32) -> (i32, i32) {
    %c0_i32 = arith.constant 0 : i32
    %c0_i32_0 = arith.constant 0 : i32
    %c0_i32_1 = arith.constant 0 : i32
    return %c0_i32, %c0_i32_0 : i32, i32
  }
  func.func @transform_4(%arg0: i32, %arg1: i32) -> (i32, i32) {
    %c0_i32 = arith.constant 0 : i32
    %c0_i32_0 = arith.constant 0 : i32
    %c0_i32_1 = arith.constant 0 : i32
    return %c0_i32, %c0_i32_0 : i32, i32
  }
  func.func @transform_5(%arg0: i32, %arg1: i32) -> (i32, i32, i32) {
    %c0_i32 = arith.constant 0 : i32
    %c0_i32_0 = arith.constant 0 : i32
    return %arg0, %c0_i32, %arg1 : i32, i32, i32
  }
}

</mosaic_0001>

<llo_original>
// kernel: block_last_forward.1
$region0: #{block_last_forward.1}
  #allocation0 [shape = 'u32[]', space=smem, size = 0x4, offset = 0x4, fixed_abs, tag = 'smem constant byte address 0x4 - core index']
  #allocation1 [shape = 'u32[144,128]{1,0:T(1,128)}', space=vmem, size = 0x12000, scoped, tag = 'internal scratch']
  %s0 = inlined_call_operand.vmem [shape: bf16[2,16,128], index: 0, kind: input, shape index: {}]
  %s1 = inlined_call_operand.vmem [shape: bf16[32,16], index: 1, kind: input, shape index: {}]
  %s2 = inlined_call_operand.vmem [shape: f32[32,1], index: 2, kind: input, shape index: {}]
  %s3 = inlined_call_operand.vmem [shape: bf16[32,32], index: 3, kind: input, shape index: {}]
  %s4 = inlined_call_operand.vmem [shape: f32[32,1], index: 4, kind: input, shape index: {}]
  %s5 = inlined_call_operand.vmem [shape: bf16[2,8,128], index: 5, kind: output, shape index: {}]
  %s6 = sld [smem:[#allocation0]]
  $region53: #{block_last_forward.1} parent=0
    _
  %s8 = ssub.s32 1, %s6
  %s9 = scalar_select 0, %s8, %s6
  loop: start=0, step=1, limit=4
  $region2: #{block_last_forward.1} parent=0 // loop_pre_header
    _
  $region3: #{block_last_forward.1} parent=0 // loop_header
    %s11 = sphi 0, %s15
    %p12 = scmp.ge.s32.totalorder %s11, 4
    %s18 = sphi 0, %s30
    %s19 = sphi 0, %s26
    %s20 = sphi 0, %s18
    %s21 = sphi 0, %s19
    %s22 = sphi 0, %s20
    %s23 = sphi 0, %s21
    %s35 = sphi 0, %s37
    %s38 = sphi 0, %s35
    %s39 = sphi 0, %s38
    %s55 = sphi 0, %s39
    %s59 = sphi 0, %s59
    %s61 = sphi 0, %s59
    %s62 = sphi 0, %s61
    %s76 = sphi 0, %s62
    %s80 = sphi 0, %s80
    %s82 = sphi 0, %s80
    %s83 = sphi 0, %s82
    %s97 = sphi 0, %s83
    %s101 = sphi 0, %s101
    %s103 = sphi 0, %s101
    %s104 = sphi 0, %s103
    %s118 = sphi 0, %s104
    %s122 = sphi 0, %s122
    %s124 = sphi 0, %s122
    %s125 = sphi 0, %s124
    %s139 = sphi 0, %s125
    %s147 = sphi 0, %s149
    %s150 = sphi 0, %s147
    %s151 = sphi 0, %s150
    %s167 = sphi 0, %s151
  $region4: #{block_last_forward.1} parent=0 // loop_header_branch
    %14 = sbr.rel (%p12) target = $region8
  $region5: #{block_last_forward.1} parent=0 // loop_body
    %s16 = ssub.s32 %s11, 1
    %s17 = ssub.s32 %s11, 2
    %s24 = sadd.s32 1, %s19
    %p25 = scmp.ge.s32.totalorder %s24, 1
    %s26 = scalar_select %p25, 0, %s24
    %s27 = sadd.s32 1, %s18
    %s28 = scalar_select %p25, %s27, %s18
    %p29 = scmp.ge.s32.totalorder %s28, 2
    %s30 = scalar_select %p29, 0, %s28
    %s31 = ssub.s32 %s18, %s30
    %s32 = ssub.s32 %s19, %s26
    %s33 = sor.u32 %s31, %s32
    %p34 = scmp.eq.s32.totalorder %s33, 0
    %s36 = sadd.s32 %s35, 1
    %s37 = scalar_select %p34, %s35, %s36
    %p40 = pneg %p34
    %p41 = scmp.eq.s32.totalorder %s11, 1
    %p42 = por %p40, %p41
    %p43 = scmp.ne.s32.totalorder %s35, %s38
    %p44 = scmp.eq.s32.totalorder %s11, 0
    %p45 = por %p43, %p44
    %p46 = scmp.ne.s32.totalorder %s35, %s38
    %p47 = scmp.eq.s32.totalorder %s16, 1
    %p48 = por %p46, %p47
    %p49 = scmp.ne.s32.totalorder %s38, %s39
    %p50 = scmp.eq.s32.totalorder %s16, 0
    %p51 = por %p49, %p50
    %p52 = scmp.ne.s32.totalorder %s38, %s39
    %p53 = scmp.eq.s32.totalorder %s17, 1
    %p54 = por %p52, %p53
    %p56 = scmp.ne.s32.totalorder %s39, %s55
    %p57 = scmp.eq.s32.totalorder %s17, 0
    %p58 = por %p56, %p57
    %s60 = sadd.s32 %s59, 1
    %p63 = scmp.eq.s32.totalorder %s11, 1
    %p64 = scmp.ne.s32.totalorder %s59, %s61
    %p65 = scmp.eq.s32.totalorder %s11, 0
    %p66 = por %p64, %p65
    %p67 = scmp.ne.s32.totalorder %s59, %s61
    %p68 = scmp.eq.s32.totalorder %s16, 1
    %p69 = por %p67, %p68
    %p70 = scmp.ne.s32.totalorder %s61, %s62
    %p71 = scmp.eq.s32.totalorder %s16, 0
    %p72 = por %p70, %p71
    %p73 = scmp.ne.s32.totalorder %s61, %s62
    %p74 = scmp.eq.s32.totalorder %s17, 1
    %p75 = por %p73, %p74
    %p77 = scmp.ne.s32.totalorder %s62, %s76
    %p78 = scmp.eq.s32.totalorder %s17, 0
    %p79 = por %p77, %p78
    %s81 = sadd.s32 %s80, 1
    %p84 = scmp.eq.s32.totalorder %s11, 1
    %p85 = scmp.ne.s32.totalorder %s80, %s82
    %p86 = scmp.eq.s32.totalorder %s11, 0
    %p87 = por %p85, %p86
    %p88 = scmp.ne.s32.totalorder %s80, %s82
    %p89 = scmp.eq.s32.totalorder %s16, 1
    %p90 = por %p88, %p89
    %p91 = scmp.ne.s32.totalorder %s82, %s83
    %p92 = scmp.eq.s32.totalorder %s16, 0
    %p93 = por %p91, %p92
    %p94 = scmp.ne.s32.totalorder %s82, %s83
    %p95 = scmp.eq.s32.totalorder %s17, 1
    %p96 = por %p94, %p95
    %p98 = scmp.ne.s32.totalorder %s83, %s97
    %p99 = scmp.eq.s32.totalorder %s17, 0
    %p100 = por %p98, %p99
    %s102 = sadd.s32 %s101, 1
    %p105 = scmp.eq.s32.totalorder %s11, 1
    %p106 = scmp.ne.s32.totalorder %s101, %s103
    %p107 = scmp.eq.s32.totalorder %s11, 0
    %p108 = por %p106, %p107
    %p109 = scmp.ne.s32.totalorder %s101, %s103
    %p110 = scmp.eq.s32.totalorder %s16, 1
    %p111 = por %p109, %p110
    %p112 = scmp.ne.s32.totalorder %s103, %s104
    %p113 = scmp.eq.s32.totalorder %s16, 0
    %p114 = por %p112, %p113
    %p115 = scmp.ne.s32.totalorder %s103, %s104
    %p116 = scmp.eq.s32.totalorder %s17, 1
    %p117 = por %p115, %p116
    %p119 = scmp.ne.s32.totalorder %s104, %s118
    %p120 = scmp.eq.s32.totalorder %s17, 0
    %p121 = por %p119, %p120
    %s123 = sadd.s32 %s122, 1
    %p126 = scmp.eq.s32.totalorder %s11, 1
    %p127 = scmp.ne.s32.totalorder %s122, %s124
    %p128 = scmp.eq.s32.totalorder %s11, 0
    %p129 = por %p127, %p128
    %p130 = scmp.ne.s32.totalorder %s122, %s124
    %p131 = scmp.eq.s32.totalorder %s16, 1
    %p132 = por %p130, %p131
    %p133 = scmp.ne.s32.totalorder %s124, %s125
    %p134 = scmp.eq.s32.totalorder %s16, 0
    %p135 = por %p133, %p134
    %p136 = scmp.ne.s32.totalorder %s124, %s125
    %p137 = scmp.eq.s32.totalorder %s17, 1
    %p138 = por %p136, %p137
    %p140 = scmp.ne.s32.totalorder %s125, %s139
    %p141 = scmp.eq.s32.totalorder %s17, 0
    %p142 = por %p140, %p141
    %s143 = ssub.s32 %s18, %s30
    %s144 = ssub.s32 %s19, %s26
    %s145 = sor.u32 %s143, %s144
    %p146 = scmp.eq.s32.totalorder %s145, 0
    %s148 = sadd.s32 %s147, 1
    %s149 = scalar_select %p146, %s147, %s148
    %p152 = pneg %p146
    %p153 = scmp.eq.s32.totalorder %s11, 1
    %p154 = por %p152, %p153
    %p155 = scmp.ne.s32.totalorder %s147, %s150
    %p156 = scmp.eq.s32.totalorder %s11, 0
    %p157 = por %p155, %p156
    %p158 = scmp.ne.s32.totalorder %s147, %s150
    %p159 = scmp.eq.s32.totalorder %s16, 1
    %p160 = por %p158, %p159
    %p161 = scmp.ne.s32.totalorder %s150, %s151
    %p162 = scmp.eq.s32.totalorder %s16, 0
    %p163 = por %p161, %p162
    %p164 = scmp.ne.s32.totalorder %s150, %s151
    %p165 = scmp.eq.s32.totalorder %s17, 1
    %p166 = por %p164, %p165
    %p168 = scmp.ne.s32.totalorder %s151, %s167
    %p169 = scmp.eq.s32.totalorder %s17, 0
    %p170 = por %p168, %p169
    %p171 = scmp.le.s32.totalorder 1, %s11
    %p172 = scmp.lt.s32.totalorder %s11, 3
    %p173 = pnand %p171, %p172
    %p174 = pneg %p173
    // Predicated region
    $region9: #{block_last_forward.1} parent=5 // pred_check
      _
    $region10: #{block_last_forward.1} parent=5 // pred_check_branch
      %176 = sbr.rel (%p173) target = $region12
    $region11: #{block_last_forward.1} parent=5 // pred_region
      %s177 = ssub.s32 %s11, 1
      // Predicated region
      $region13: #{block_last_forward.1} parent=11 // pred_check
        %p178 = pneg %p72
      $region14: #{block_last_forward.1} parent=11 // pred_check_branch
        %180 = sbr.rel (%p178) target = $region16
      $region15: #{block_last_forward.1} parent=11 // pred_region
        _
      $region16: #{block_last_forward.1} parent=11 // pred_fallthru
        _
      // Predicated region
      $region17: #{block_last_forward.1} parent=11 // pred_check
        %p181 = pneg %p93
      $region18: #{block_last_forward.1} parent=11 // pred_check_branch
        %183 = sbr.rel (%p181) target = $region20
      $region19: #{block_last_forward.1} parent=11 // pred_region
        _
      $region20: #{block_last_forward.1} parent=11 // pred_fallthru
        _
      // Predicated region
      $region21: #{block_last_forward.1} parent=11 // pred_check
        %p184 = pneg %p114
      $region22: #{block_last_forward.1} parent=11 // pred_check_branch
        %186 = sbr.rel (%p184) target = $region24
      $region23: #{block_last_forward.1} parent=11 // pred_region
        _
      $region24: #{block_last_forward.1} parent=11 // pred_fallthru
        _
      // Predicated region
      $region25: #{block_last_forward.1} parent=11 // pred_check
        %p187 = pneg %p135
      $region26: #{block_last_forward.1} parent=11 // pred_check_branch
        %189 = sbr.rel (%p187) target = $region28
      $region27: #{block_last_forward.1} parent=11 // pred_region
        _
      $region28: #{block_last_forward.1} parent=11 // pred_fallthru
        _
    $region12: #{block_last_forward.1} parent=5 // pred_fallthru
      _
    %p190 = scmp.lt.s32.totalorder %s11, 2
    // Predicated region
    $region29: #{block_last_forward.1} parent=5 // pred_check
      %p191 = pneg %p190
    $region30: #{block_last_forward.1} parent=5 // pred_check_branch
      %193 = sbr.rel (%p191) target = $region32
    $region31: #{block_last_forward.1} parent=5 // pred_region
      // Predicated region
      $region33: #{block_last_forward.1} parent=31 // pred_check
        %p194 = pneg %p45
      $region34: #{block_last_forward.1} parent=31 // pred_check_branch
        %196 = sbr.rel (%p194) target = $region36
      $region35: #{block_last_forward.1} parent=31 // pred_region
        %p197 = scmp.lt.s32.totalorder %s18, 1
        %s198 = scalar_select %p197, %s18, 1
        %p199 = scmp.lt.s32.totalorder %s19, 0
        %s200 = scalar_select %p199, %s19, 0
        %s201 = smul.addr %s198, 2
        %s202 = sadd.s32 %s200, %s201
        %s203 = smul.addr %s202, 4
        %s204 = scalar_lea.vmem %s0, %s203
      $region36: #{block_last_forward.1} parent=31 // pred_fallthru
        _
    $region32: #{block_last_forward.1} parent=5 // pred_fallthru
      _
    %p205 = scmp.le.s32.totalorder 1, %s11
    %p206 = scmp.lt.s32.totalorder %s11, 3
    %p207 = pnand %p205, %p206
    %p208 = pneg %p207
    // Predicated region
    $region37: #{block_last_forward.1} parent=5 // pred_check
      _
    $region38: #{block_last_forward.1} parent=5 // pred_check_branch
      %210 = sbr.rel (%p207) target = $region40
    $region39: #{block_last_forward.1} parent=5 // pred_region
      %s211 = ssub.s32 %s11, 1
      %p212 = scmp.lt.s32.totalorder %s20, 1
      %s213 = scalar_select %p212, %s20, 1
      %p214 = scmp.lt.s32.totalorder %s21, 0
      %s215 = scalar_select %p214, %s21, 0
      %s216 = smul.addr %s213, 2
      %s217 = sadd.s32 %s215, %s216
      %s218 = smul.addr %s217, 4
      %s219 = scalar_lea.vmem %s0, %s218
      %p220 = pneg %p51
      %p221 = pneg %p48
      %p222 = pneg %p72
      %p223 = pneg %p69
      %p224 = pneg %p93
      %p225 = pneg %p90
      %p226 = pneg %p114
      %p227 = pneg %p111
      %p228 = pneg %p135
      %p229 = pneg %p132
      %p230 = pneg %p163
      %p231 = pneg %p160
      %p232 = scmp.lt.s32.totalorder %s20, 1
      %s233 = scalar_select %p232, %s20, 1
      %p234 = scmp.lt.s32.totalorder %s21, 0
      %s235 = scalar_select %p234, %s21, 0
      %s236 = sadd.s32 %s235, %s233
      %s237 = smul.addr %s236, 4
      %s238 = scalar_lea.vmem %s5, %s237
      %p239 = scmp.lt.s32.totalorder %s20, 1
      %s240 = scalar_select %p239, %s20, 1
      %p241 = scmp.lt.s32.totalorder %s21, 0
      %s242 = scalar_select %p241, %s21, 0
      %s243 = smul.addr %s240, 2
      %s244 = sadd.s32 %s242, %s243
      %s245 = smul.addr %s244, 4
      %s246 = scalar_lea.vmem %s0, %s245
      %p247 = scmp.lt.s32.totalorder %s20, 1
      %s248 = scalar_select %p247, %s20, 1
      %p249 = scmp.lt.s32.totalorder %s21, 0
      %s250 = scalar_select %p249, %s21, 0
      %s251 = sadd.s32 %s250, %s248
      %s252 = smul.addr %s251, 4
      %s253 = scalar_lea.vmem %s5, %s252
      %v255 = vld [vmem:[%s246] sm:$0xf]
      %v256 = vld [vmem:[%s246 + $0x4] sm:$0xf]
      %v257 = vld [vmem:[%s1] sm:$0xf]
      %v258 = vld [vmem:[%s1 + $0x4] sm:$0xf]
      %v259 = vld [vmem:[%s1 + $0x8] sm:$0xf]
      %v260 = vld [vmem:[%s1 + $0xc] sm:$0xf]
      %v261 = vld [vmem:[%s2] sm:$0xff]
      %v262 = vld [vmem:[%s2 + $0x8] sm:$0xff]
      %v263 = vld [vmem:[%s2 + $0x10] sm:$0xff]
      %v264 = vld [vmem:[%s2 + $0x18] sm:$0xff]
      %v265 = vld [vmem:[%s3] sm:$0xf]
      %v266 = vld [vmem:[%s3 + $0x4] sm:$0xf]
      %v267 = vld [vmem:[%s3 + $0x8] sm:$0xf]
      %v268 = vld [vmem:[%s3 + $0xc] sm:$0xf]
      %v269 = vld [vmem:[%s4] sm:$0xff]
      %v270 = vld [vmem:[%s4 + $0x8] sm:$0xff]
      %v271 = vld [vmem:[%s4 + $0x10] sm:$0xff]
      %v272 = vld [vmem:[%s4 + $0x18] sm:$0xff]
      %274 = vset.pattern.permute.xlu0 0
      %275 = vperm.xlu0 %274, %v261
      %v276 = vpop.permute.xlu0 %275
      %279 = vset.pattern.permute.xlu0 0
      %280 = vperm.xlu0 %279, %v262
      %v281 = vpop.permute.xlu0 %280
      %284 = vset.pattern.permute.xlu0 0
      %285 = vperm.xlu0 %284, %v263
      %v286 = vpop.permute.xlu0 %285
      %289 = vset.pattern.permute.xlu0 0
      %290 = vperm.xlu0 %289, %v264
      %v291 = vpop.permute.xlu0 %290
      %v297 = vunpack.c.l.b16 %v257
      %v298 = vunpack.c.l.b16 %v258
      %v299 = vunpack.c.l.b16 %v259
      %v300 = vunpack.c.l.b16 %v260
      %v301 = vpack.c.b16 %v298, %v297
      %v302 = vpack.c.b16 %v300, %v299
      %v305 = vunpack.c.l.b16 %v255
      %v306 = vunpack.c.l.b16 %v256
      %v307 = vpack.c.b16 %v306, %v305
      %vm309 = vcmask 130048
      %v311 = vsel %vm309, %v301, 0
      %v314 = vsel %vm309, %v302, 0
      %316 = vmatprep.subr.bf16.mxu0 0
      %317 = vmatpush1.bf16.msra.mxu0 0
      %318 = vmatprep.subr.bf16.mxu0 0
      %319 = vmatpush1.bf16.msra.mxu0 0
      %320 = vmatprep.subr.bf16.mxu0 0
      %321 = vmatpush1.bf16.msra.mxu0 0
      %322 = vmatprep.subr.bf16.mxu0 0
      %323 = vmatpush1.bf16.msra.mxu0 0
      %324 = vmatprep.subr.bf16.mxu0 0
      %325 = vmatpush1.bf16.msra.mxu0 0
      %326 = vmatprep.subr.bf16.mxu0 0
      %327 = vmatpush1.bf16.msra.mxu0 0
      %328 = vmatprep.subr.bf16.mxu0 0
      %329 = vmatpush1.bf16.msra.mxu0 0
      %330 = vmatprep.subr.bf16.mxu0 0
      %331 = vmatpush1.bf16.msra.mxu0 %v307
      %332 = vmatprep.subr.bf16.mxu0 0
      %333 = vmatpush2.bf16.msra.mxu0 0
      %334 = vmatprep.subr.bf16.mxu0 0
      %335 = vmatpush2.bf16.msra.mxu0 0
      %336 = vmatprep.subr.bf16.mxu0 0
      %337 = vmatpush2.bf16.msra.mxu0 0
      %338 = vmatprep.subr.bf16.mxu0 0
      %339 = vmatpush2.bf16.msra.mxu0 0
      %340 = vmatprep.subr.bf16.mxu0 0
      %341 = vmatpush2.bf16.msra.mxu0 0
      %342 = vmatprep.subr.bf16.mxu0 0
      %343 = vmatpush2.bf16.msra.mxu0 0
      %344 = vmatprep.subr.bf16.mxu0 0
      %345 = vmatpush2.bf16.msra.mxu0 0
      %346 = vmatprep.subr.bf16.mxu0 0
      %347 = vmatpush2.bf16.msra.mxu0 0
      %348 = vmatprep.mubr.bf16.mxu0 0
      %349 = vmatmul.mubr.bf16.gmra.mxu0 %v311
      %v350 = vpop.f32.mrf.mxu0
      %v351 = vadd.f32 %v276, %v350
      %v352 = vpop.f32.mrf.mxu0
      %v353 = vpop.f32.mrf.mxu0
      %v354 = vadd.f32 %v281, %v353
      %v355 = vpop.f32.mrf.mxu0
      %356 = vmatprep.mubr.bf16.mxu0 0
      %357 = vmatmul.mubr.bf16.gmra.mxu0 %v314
      %v358 = vpop.f32.mrf.mxu0
      %v359 = vadd.f32 %v286, %v358
      %v360 = vpop.f32.mrf.mxu0
      %v361 = vpop.f32.mrf.mxu0
      %v362 = vadd.f32 %v291, %v361
      %v363 = vpop.f32.mrf.mxu0
      %364 = vdwg.mxu0
      %v365 = vmax.f32 %v351, 0.0
      %v366 = vmax.f32 %v354, 0.0
      %v367 = vmax.f32 %v359, 0.0
      %v368 = vmax.f32 %v362, 0.0
      %v369 = vpack.c.bf16 %v366, %v365
      %v370 = vpack.c.bf16 %v368, %v367
      %372 = vset.pattern.permute.xlu0 0
      %373 = vperm.xlu0 %372, %v269
      %v374 = vpop.permute.xlu0 %373
      %377 = vset.pattern.permute.xlu0 0
      %378 = vperm.xlu0 %377, %v270
      %v379 = vpop.permute.xlu0 %378
      %382 = vset.pattern.permute.xlu0 0
      %383 = vperm.xlu0 %382, %v271
      %v384 = vpop.permute.xlu0 %383
      %387 = vset.pattern.permute.xlu0 0
      %388 = vperm.xlu0 %387, %v272
      %v389 = vpop.permute.xlu0 %388
      %v395 = vunpack.c.l.b16 %v265
      %v396 = vunpack.c.l.b16 %v266
      %v397 = vunpack.c.l.b16 %v267
      %v398 = vunpack.c.l.b16 %v268
      %v399 = vpack.c.b16 %v396, %v395
      %v400 = vpack.c.b16 %v398, %v397
      %vm401 = vcmask 261120
      %v403 = vsel %vm401, %v399, 0
      %v406 = vsel %vm401, %v400, 0
      %408 = vmatprep.subr.bf16.mxu0 0
      %409 = vmatpush1.bf16.msra.mxu0 0
      %410 = vmatprep.subr.bf16.mxu0 0
      %411 = vmatpush1.bf16.msra.mxu0 0
      %412 = vmatprep.subr.bf16.mxu0 0
      %413 = vmatpush1.bf16.msra.mxu0 0
      %414 = vmatprep.subr.bf16.mxu0 0
      %415 = vmatpush1.bf16.msra.mxu0 0
      %416 = vmatprep.subr.bf16.mxu0 0
      %417 = vmatpush1.bf16.msra.mxu0 0
      %418 = vmatprep.subr.bf16.mxu0 0
      %419 = vmatpush1.bf16.msra.mxu0 0
      %420 = vmatprep.subr.bf16.mxu0 0
      %421 = vmatpush1.bf16.msra.mxu0 %v370
      %422 = vmatprep.subr.bf16.mxu0 0
      %423 = vmatpush1.bf16.msra.mxu0 %v369
      %424 = vmatprep.subr.bf16.mxu0 0
      %425 = vmatpush2.bf16.msra.mxu0 0
      %426 = vmatprep.subr.bf16.mxu0 0
      %427 = vmatpush2.bf16.msra.mxu0 0
      %428 = vmatprep.subr.bf16.mxu0 0
      %429 = vmatpush2.bf16.msra.mxu0 0
      %430 = vmatprep.subr.bf16.mxu0 0
      %431 = vmatpush2.bf16.msra.mxu0 0
      %432 = vmatprep.subr.bf16.mxu0 0
      %433 = vmatpush2.bf16.msra.mxu0 0
      %434 = vmatprep.subr.bf16.mxu0 0
      %435 = vmatpush2.bf16.msra.mxu0 0
      %436 = vmatprep.subr.bf16.mxu0 0
      %437 = vmatpush2.bf16.msra.mxu0 0
      %438 = vmatprep.subr.bf16.mxu0 0
      %439 = vmatpush2.bf16.msra.mxu0 0
      %440 = vmatprep.mubr.bf16.mxu0 0
      %441 = vmatmul.mubr.bf16.gmra.mxu0 %v403
      %v442 = vpop.f32.mrf.mxu0
      %v443 = vadd.f32 %v374, %v442
      %v444 = vpop.f32.mrf.mxu0
      %v445 = vpop.f32.mrf.mxu0
      %v446 = vadd.f32 %v379, %v445
      %v447 = vpop.f32.mrf.mxu0
      %448 = vmatprep.mubr.bf16.mxu0 0
      %449 = vmatmul.mubr.bf16.gmra.mxu0 %v406
      %v450 = vpop.f32.mrf.mxu0
      %v451 = vadd.f32 %v384, %v450
      %v452 = vpop.f32.mrf.mxu0
      %v453 = vpop.f32.mrf.mxu0
      %v454 = vadd.f32 %v389, %v453
      %v455 = vpop.f32.mrf.mxu0
      %456 = vdwg.mxu0
      %v457 = vmax.f32 %v443, 0.0
      %v458 = vmax.f32 %v446, 0.0
      %v459 = vmax.f32 %v451, 0.0
      %v460 = vmax.f32 %v454, 0.0
      %v461 = vmax.f32 %v457, %v458
      %v462 = vmax.f32 %v461, %v459
      %v463 = vmax.f32 %v462, %v460
      %v464 = vpack.c.bf16 %v463, %v463
      %465 = vst [vmem:[%s253] sm:$0xf] %v464
      %p466 = scmp.lt.s32.totalorder %s20, 1
      %s467 = scalar_select %p466, %s20, 1
      %p468 = scmp.lt.s32.totalorder %s21, 0
      %s469 = scalar_select %p468, %s21, 0
      %s470 = sadd.s32 %s469, %s467
      %s471 = smul.addr %s470, 4
      %s472 = scalar_lea.vmem %s5, %s471
      // Predicated region
      $region41: #{block_last_forward.1} parent=39 // pred_check
        %p473 = pneg %p160
      $region42: #{block_last_forward.1} parent=39 // pred_check_branch
        %475 = sbr.rel (%p473) target = $region44
      $region43: #{block_last_forward.1} parent=39 // pred_region
        _
      $region44: #{block_last_forward.1} parent=39 // pred_fallthru
        _
    $region40: #{block_last_forward.1} parent=5 // pred_fallthru
      _
    %p476 = scmp.le.s32.totalorder 2, %s11
    // Predicated region
    $region45: #{block_last_forward.1} parent=5 // pred_check
      %p477 = pneg %p476
    $region46: #{block_last_forward.1} parent=5 // pred_check_branch
      %479 = sbr.rel (%p477) target = $region48
    $region47: #{block_last_forward.1} parent=5 // pred_region
      %s480 = ssub.s32 %s11, 2
      // Predicated region
      $region49: #{block_last_forward.1} parent=47 // pred_check
        %p481 = pneg %p166
      $region50: #{block_last_forward.1} parent=47 // pred_check_branch
        %483 = sbr.rel (%p481) target = $region52
      $region51: #{block_last_forward.1} parent=47 // pred_region
        %p484 = scmp.lt.s32.totalorder %s22, 1
        %s485 = scalar_select %p484, %s22, 1
        %p486 = scmp.lt.s32.totalorder %s23, 0
        %s487 = scalar_select %p486, %s23, 0
        %s488 = sadd.s32 %s487, %s485
        %s489 = smul.addr %s488, 4
        %s490 = scalar_lea.vmem %s5, %s489
      $region52: #{block_last_forward.1} parent=47 // pred_fallthru
        _
    $region48: #{block_last_forward.1} parent=5 // pred_fallthru
      _
  $region6: #{block_last_forward.1} parent=0 // loop_footer
    %s15 = sadd.s32 1, %s11
  $region7: #{block_last_forward.1} parent=0 // loop_footer_branch
    %10 = sbr.rel target = $region3
  $region8: #{block_last_forward.1} parent=0 // loop_exit
    _

</llo_original>
